<compile_context>
chip_gen: v6e
topology: v6e:2x2x1
jax: 0.10.0
libtpu: 0.0.40
codegen_flags: <defaults>
</compile_context>

<pallas_src>
import jax
import jax.numpy as jnp
from jax.experimental import pallas as pl
from jax.experimental.pallas import tpu as pltpu


# ---------------------------------------------------------------------------
# Pallas kernel: folded 1x1 conv + BatchNorm affine on a lane-dense spatial tile
# ---------------------------------------------------------------------------
def _conv_bn_apply_kernel(x_ref, w_ref, shift_ref, o_ref):
    # x_ref:     [1, Cin, TM]   channel-major input tile
    # w_ref:     [Cout, Cin]    conv weight with the BN scale pre-folded
    # shift_ref: [Cout, 1]      folded BN shift (beta - mean * scale)
    # o_ref:     [1, Cout, TM]  lane-dense output tile
    x = x_ref[0]                                                          # [Cin, TM]
    y = jnp.dot(w_ref[...], x, preferred_element_type=jnp.float32)       # [Cout, TM]
    o_ref[0] = (y + shift_ref[...]).astype(o_ref.dtype)                  # broadcast over lanes


# ---------------------------------------------------------------------------
# Glue helpers
# ---------------------------------------------------------------------------
def _bilinear_matrix(n_in, n_out):
    """Interpolation matrix for nn.UpsamplingBilinear2d (align_corners=True)."""
    if n_in == 1:
        return jnp.ones((n_out, 1), jnp.float32)
    src = jnp.arange(n_out, dtype=jnp.float32) * (n_in - 1) / (n_out - 1)
    i0 = jnp.clip(jnp.floor(src).astype(jnp.int32), 0, n_in - 1)
    i1 = jnp.minimum(i0 + 1, n_in - 1)
    w1 = src - i0.astype(jnp.float32)
    w0 = 1.0 - w1
    rows = jnp.arange(n_out)
    a = jnp.zeros((n_out, n_in), jnp.float32)
    a = a.at[rows, i0].add(w0)
    a = a.at[rows, i1].add(w1)
    return a


def _pick_spatial_tile(m_sp, n_batch, c_in, c_out,
                       vmem_block_budget=20 * 1024 * 1024, hard_cap=32768):
    """Spatial (lane) tile width for the conv+BN kernel.

    Goals: multiple of 128 (unmasked lane-dense stores) unless it spans the whole extent;
    as large as the double-buffered VMEM block budget allows (amortizes the ~0.35us
    per-grid-step cost); total grid >= 2 steps so megacore (v7x) can split the work.
    The tile does NOT have to divide m_sp: a partial tail tile is clipped by Pallas.
    """
    # Double-buffered f32 blocks cost 2 * 4B * (Cin + Cout) bytes per spatial element.
    cap = vmem_block_budget // (8 * (c_in + c_out))
    cap = min(hard_cap, cap)
    if n_batch == 1:                       # need >= 2 spatial tiles for the second TC
        cap = min(cap, (m_sp + 1) // 2)
    cap = max(128, (cap // 128) * 128)
    if m_sp <= cap:
        return m_sp                        # single full-extent tile per image (always legal)
    # Prefer the largest multiple of 128 <= cap that divides m_sp (no wasted tail compute);
    # otherwise accept a partial last tile.
    best = 0
    for t in range(128, cap + 1, 128):
        if m_sp % t == 0:
            best = t
    return best if best >= cap // 2 else cap


# ---------------------------------------------------------------------------
# Wrapper (forward pass of UpSampleEmbed)
# ---------------------------------------------------------------------------
def upsample_embed(x_nchw, weight, bias, gamma, beta, eps=1e-5, out_dtype=jnp.float32):
    """x_nchw: [N, Cin, H, W]; weight: [Cout, Cin, 1, 1] (PyTorch 1x1 conv layout).

    `bias` is accepted for API parity but is mathematically a no-op under training-mode
    BatchNorm (cancelled exactly by the mean subtraction), so it is dropped.
    """
    del bias
    N, Cin, H, W = x_nchw.shape
    Cout = weight.shape[0]
    w = weight.reshape(Cout, Cin).astype(jnp.float32)
    x32 = x_nchw.astype(jnp.float32)

    hp, wp = 2 * H, 2 * W
    m_sp = hp * wp
    m_total = N * m_sp

    # --- bilinear x2 upsample, align_corners=True, as a separable linear map ------------
    a_h = _bilinear_matrix(H, hp)                                        # [2H, H]
    a_w = _bilinear_matrix(W, wp)                                        # [2W, W]

    # --- exact batch statistics from the LOW-RES input (Gram trick; no stats pass) ------
    # Rows of a_h / a_w sum to 1, so upsample(const) = const and centering commutes with
    # the upsample; the centered Gram avoids E[y^2]-E[y]^2 cancellation.
    r_h = jnp.sum(a_h, axis=0)                                           # [H]
    r_w = jnp.sum(a_w, axis=0)                                           # [W]
    xbar = jnp.einsum("nchw,h,w->c", x32, r_h, r_w) / m_total            # [Cin]
    xc = x32 - xbar[None, :, None, None]
    g_h = a_h.T @ a_h                                                    # [H, H]
    g_w = a_w.T @ a_w                                                    # [W, W]
    t = jnp.einsum("ndhw,vw->ndhv", xc, g_w)
    t = jnp.einsum("ab,ndbw->ndaw", g_h, t)
    s_c = jnp.einsum("nchw,ndhw->cd", xc, t)                             # [Cin, Cin]
    mean = w @ xbar                                                      # [Cout] (bias dropped)
    var = jnp.maximum(jnp.einsum("oc,cd,od->o", w, s_c, w) / m_total, 0.0)

    inv = jax.lax.rsqrt(var + eps)
    scale = gamma.astype(jnp.float32) * inv                              # [Cout]
    shift = beta.astype(jnp.float32) - mean * scale                      # [Cout]
    w_scaled = w * scale[:, None]                                        # fold scale into W
    shift_col = shift[:, None]                                           # [Cout, 1]

    # --- materialize x_up channel-major (small: Cin * M) --------------------------------
    x_up = jnp.einsum("nchw,Hh,Ww->ncHW", x32, a_h, a_w)
    x_flat = x_up.reshape(N, Cin, m_sp)

    # --- single Pallas pass: folded conv + BN affine, large lane-dense tiles ------------
    tm = _pick_spatial_tile(m_sp, N, Cin, Cout)
    n_sp = pl.cdiv(m_sp, tm)
    out_bytes = jnp.dtype(out_dtype).itemsize

    out_flat = pl.pallas_call(
        _conv_bn_apply_kernel,
        out_shape=jax.ShapeDtypeStruct((N, Cout, m_sp), out_dtype),
        grid=(N, n_sp),
        in_specs=[
            pl.BlockSpec((1, Cin, tm), lambda b, j: (b, 0, j)),
            pl.BlockSpec((Cout, Cin), lambda b, j: (0, 0)),
            pl.BlockSpec((Cout, 1), lambda b, j: (0, 0)),
        ],
        out_specs=pl.BlockSpec((1, Cout, tm), lambda b, j: (b, 0, j)),
        compiler_params=pltpu.CompilerParams(
            dimension_semantics=("parallel", "parallel"),
            vmem_limit_bytes=32 * 1024 * 1024),
        cost_estimate=pl.CostEstimate(
            flops=2 * m_total * Cin * Cout + m_total * Cout,
            transcendentals=0,
            bytes_accessed=4 * m_total * Cin + out_bytes * m_total * Cout
                           + 4 * (Cout * Cin + Cout)),
    )(x_flat, w_scaled, shift_col)

    return out_flat.reshape(N, Cout, hp, wp)                             # already NCHW


# ---------------------------------------------------------------------------
# Self-test
# ---------------------------------------------------------------------------
if __name__ == "__main__":
    N, Cin, H, W = 2, 3, 16, 16
    embed_dim = 32

    key = jax.random.PRNGKey(0)
    k_x, k_w = jax.random.split(key)

    x = jax.random.uniform(k_x, (N, Cin, H, W), dtype=jnp.float32)

    # _init_weights for the 1x1 conv: N(0, sqrt(2/fan_out)), fan_out = 1*1*embed_dim; bias = 0.
    fan_out = 1 * 1 * embed_dim
    std = (2.0 / fan_out) ** 0.5
    weight = std * jax.random.normal(k_w, (embed_dim, Cin, 1, 1), dtype=jnp.float32)
    bias = jnp.zeros((embed_dim,), jnp.float32)
    gamma = jnp.ones((embed_dim,), jnp.float32)     # BatchNorm2d init
    beta = jnp.zeros((embed_dim,), jnp.float32)

    fwd = jax.jit(upsample_embed)
    out = fwd(x, weight, bias, gamma, beta)
    jax.block_until_ready(out)
    assert out.shape == (N, embed_dim, 2 * H, 2 * W)

    # Pure-JAX reference (includes the conv bias; it cancels under training-mode BN).
    a_h = _bilinear_matrix(H, 2 * H)
    a_w = _bilinear_matrix(W, 2 * W)
    x_up = jnp.einsum("nchw,Hh,Ww->ncHW", x, a_h, a_w)
    conv = jnp.einsum("ncHW,oc->noHW", x_up, weight.reshape(embed_dim, Cin))
    conv = conv + bias[None, :, None, None]
    mean = conv.mean(axis=(0, 2, 3), keepdims=True)
    var = conv.var(axis=(0, 2, 3), keepdims=True)                        # biased, like BN
    ref = (gamma[None, :, None, None] * (conv - mean) * jax.lax.rsqrt(var + 1e-5)
           + beta[None, :, None, None])
    err = float(jnp.max(jnp.abs(out - ref)))
    assert err < 1e-3, f"max abs error {err}"
    print("KERNEL_OK")
</pallas_src>

<mosaic_0001>
module attributes {stable_mosaic.version = 11 : i64} {
  func.func private @main(%arg0: i32) attributes {dimension_semantics = [#tpu.dimension_semantics<core_parallel>], iteration_bounds = array<i64: 2>, tpu.core_type = #tpu.core_type<sc_scalar_subcore>, window_params = []} {
    return
  }
}

module attributes {stable_mosaic.version = 11 : i64} {
  func.func private @main(%arg0: i32) attributes {dimension_semantics = [#tpu.dimension_semantics<core_parallel>], iteration_bounds = array<i64: 2>, tpu.core_type = #tpu.core_type<sc_scalar_subcore>, window_params = []} {
    return
  }
}

module attributes {stable_mosaic.version = 11 : i64} {
  func.func @_conv_bn_apply_kernel(%arg0: i32, %arg1: i32, %arg2: memref<1x3x1024xf32, #tpu.memory_space<vmem>>, %arg3: memref<32x3xf32, #tpu.memory_space<vmem>>, %arg4: memref<32x1xf32, #tpu.memory_space<vmem>>, %arg5: memref<1x32x1024xf32, #tpu.memory_space<vmem>>) attributes {dimension_semantics = [#tpu.dimension_semantics<parallel>, #tpu.dimension_semantics<parallel>], iteration_bounds = array<i64: 2, 1>, scalar_prefetch = 0 : i64, scratch_operands = 0 : i64, tpu.core_type = #tpu.core_type<tc>, window_params = [{transform_indices = @transform_0, window_bounds = array<i64: 1, 3, 1024>}, {pipeline_mode = #tpu.pipeline_mode<synchronous>, transform_indices = @transform_1, window_bounds = array<i64: 32, 3>}, {pipeline_mode = #tpu.pipeline_mode<synchronous>, transform_indices = @transform_2, window_bounds = array<i64: 32, 1>}, {transform_indices = @transform_3, window_bounds = array<i64: 1, 32, 1024>}]} {
    %c0 = arith.constant 0 : index
    %c0_0 = arith.constant 0 : index
    %c0_1 = arith.constant 0 : index
    %0 = vector.load %arg2[%c0, %c0_0, %c0_1] : memref<1x3x1024xf32, #tpu.memory_space<vmem>>, vector<1x3x1024xf32>
    %1 = vector.shape_cast %0 : vector<1x3x1024xf32> to vector<3x1024xf32>
    %c0_2 = arith.constant 0 : index
    %c0_3 = arith.constant 0 : index
    %2 = vector.load %arg3[%c0_2, %c0_3] : memref<32x3xf32, #tpu.memory_space<vmem>>, vector<32x3xf32>
    %cst = arith.constant dense<0.000000e+00> : vector<32x1024xf32>
    %3 = tpu.matmul %2, %1, %cst {dimension_numbers = #tpu.dot_dimension_numbers<[1], [0], [0], [1], [0, 0, 1, 1], [], []>} : vector<32x3xf32>, vector<3x1024xf32>, vector<32x1024xf32> -> vector<32x1024xf32>
    %c0_4 = arith.constant 0 : index
    %c0_5 = arith.constant 0 : index
    %4 = vector.load %arg4[%c0_4, %c0_5] : memref<32x1xf32, #tpu.memory_space<vmem>>, vector<32x1xf32>
    %5 = vector.broadcast %4 : vector<32x1xf32> to vector<32x1024xf32>
    %6 = arith.addf %3, %5 : vector<32x1024xf32>
    %c0_6 = arith.constant 0 : index
    %c0_7 = arith.constant 0 : index
    %c0_8 = arith.constant 0 : index
    %7 = vector.load %arg5[%c0_6, %c0_7, %c0_8] : memref<1x32x1024xf32, #tpu.memory_space<vmem>>, vector<1x32x1024xf32>
    %8 = vector.shape_cast %7 : vector<1x32x1024xf32> to vector<32x1024xf32>
    %9 = vector.shape_cast %6 : vector<32x1024xf32> to vector<1x32x1024xf32>
    tpu.vector_store %arg5[%c0_6, %c0_7, %c0_8], %9 {strides = array<i32>} : memref<1x32x1024xf32, #tpu.memory_space<vmem>>, vector<1x32x1024xf32>,
    return
  }
  func.func @transform_0(%arg0: i32, %arg1: i32) -> (i32, i32, i32) {
    %c0_i32 = arith.constant 0 : i32
    %c0_i32_0 = arith.constant 0 : i32
    return %arg0, %c0_i32, %arg1 : i32, i32, i32
  }
  func.func @transform_1(%arg0: i32, %arg1: i32) -> (i32, i32) {
    %c0_i32 = arith.constant 0 : i32
    %c0_i32_0 = arith.constant 0 : i32
    %c0_i32_1 = arith.constant 0 : i32
    return %c0_i32, %c0_i32_0 : i32, i32
  }
  func.func @transform_2(%arg0: i32, %arg1: i32) -> (i32, i32) {
    %c0_i32 = arith.constant 0 : i32
    %c0_i32_0 = arith.constant 0 : i32
    %c0_i32_1 = arith.constant 0 : i32
    return %c0_i32, %c0_i32_0 : i32, i32
  }
  func.func @transform_3(%arg0: i32, %arg1: i32) -> (i32, i32, i32) {
    %c0_i32 = arith.constant 0 : i32
    %c0_i32_0 = arith.constant 0 : i32
    return %arg0, %c0_i32, %arg1 : i32, i32, i32
  }
}

</mosaic_0001>

<llo_original>
// kernel: upsample_embed.1
$region0: #{upsample_embed.1}
  #allocation0 [shape = 'u32[]', space=smem, size = 0x4, offset = 0x4, fixed_abs, tag = 'smem constant byte address 0x4 - core index']
  #allocation1 [shape = 'u32[144,128]{1,0:T(1,128)}', space=vmem, size = 0x12000, scoped, tag = 'internal scratch']
  %s0 = inlined_call_operand.vmem [shape: f32[2,3,1024], index: 0, kind: input, shape index: {}]
  %s1 = inlined_call_operand.vmem [shape: f32[32,3], index: 1, kind: input, shape index: {}]
  %s2 = inlined_call_operand.vmem [shape: f32[32,1], index: 2, kind: input, shape index: {}]
  %s3 = inlined_call_operand.vmem [shape: f32[2,32,1024], index: 3, kind: output, shape index: {}]
  %s4 = sld [smem:[#allocation0]]
  $region45: #{upsample_embed.1} parent=0
    _
  %s6 = ssub.s32 1, %s4
  %s7 = scalar_select 0, %s6, %s4
  loop: start=0, step=1, limit=4
  $region2: #{upsample_embed.1} parent=0 // loop_pre_header
    _
  $region3: #{upsample_embed.1} parent=0 // loop_header
    %s9 = sphi 0, %s13
    %p10 = scmp.ge.s32.totalorder %s9, 4
    %s16 = sphi 0, %s28
    %s17 = sphi 0, %s24
    %s18 = sphi 0, %s16
    %s19 = sphi 0, %s17
    %s20 = sphi 0, %s18
    %s21 = sphi 0, %s19
    %s33 = sphi 0, %s35
    %s36 = sphi 0, %s33
    %s37 = sphi 0, %s36
    %s53 = sphi 0, %s37
    %s57 = sphi 0, %s57
    %s59 = sphi 0, %s57
    %s60 = sphi 0, %s59
    %s74 = sphi 0, %s60
    %s78 = sphi 0, %s78
    %s80 = sphi 0, %s78
    %s81 = sphi 0, %s80
    %s95 = sphi 0, %s81
    %s103 = sphi 0, %s105
    %s106 = sphi 0, %s103
    %s107 = sphi 0, %s106
    %s123 = sphi 0, %s107
  $region4: #{upsample_embed.1} parent=0 // loop_header_branch
    %12 = sbr.rel (%p10) target = $region8
  $region5: #{upsample_embed.1} parent=0 // loop_body
    %s14 = ssub.s32 %s9, 1
    %s15 = ssub.s32 %s9, 2
    %s22 = sadd.s32 1, %s17
    %p23 = scmp.ge.s32.totalorder %s22, 1
    %s24 = scalar_select %p23, 0, %s22
    %s25 = sadd.s32 1, %s16
    %s26 = scalar_select %p23, %s25, %s16
    %p27 = scmp.ge.s32.totalorder %s26, 2
    %s28 = scalar_select %p27, 0, %s26
    %s29 = ssub.s32 %s16, %s28
    %s30 = ssub.s32 %s17, %s24
    %s31 = sor.u32 %s29, %s30
    %p32 = scmp.eq.s32.totalorder %s31, 0
    %s34 = sadd.s32 %s33, 1
    %s35 = scalar_select %p32, %s33, %s34
    %p38 = pneg %p32
    %p39 = scmp.eq.s32.totalorder %s9, 1
    %p40 = por %p38, %p39
    %p41 = scmp.ne.s32.totalorder %s33, %s36
    %p42 = scmp.eq.s32.totalorder %s9, 0
    %p43 = por %p41, %p42
    %p44 = scmp.ne.s32.totalorder %s33, %s36
    %p45 = scmp.eq.s32.totalorder %s14, 1
    %p46 = por %p44, %p45
    %p47 = scmp.ne.s32.totalorder %s36, %s37
    %p48 = scmp.eq.s32.totalorder %s14, 0
    %p49 = por %p47, %p48
    %p50 = scmp.ne.s32.totalorder %s36, %s37
    %p51 = scmp.eq.s32.totalorder %s15, 1
    %p52 = por %p50, %p51
    %p54 = scmp.ne.s32.totalorder %s37, %s53
    %p55 = scmp.eq.s32.totalorder %s15, 0
    %p56 = por %p54, %p55
    %s58 = sadd.s32 %s57, 1
    %p61 = scmp.eq.s32.totalorder %s9, 1
    %p62 = scmp.ne.s32.totalorder %s57, %s59
    %p63 = scmp.eq.s32.totalorder %s9, 0
    %p64 = por %p62, %p63
    %p65 = scmp.ne.s32.totalorder %s57, %s59
    %p66 = scmp.eq.s32.totalorder %s14, 1
    %p67 = por %p65, %p66
    %p68 = scmp.ne.s32.totalorder %s59, %s60
    %p69 = scmp.eq.s32.totalorder %s14, 0
    %p70 = por %p68, %p69
    %p71 = scmp.ne.s32.totalorder %s59, %s60
    %p72 = scmp.eq.s32.totalorder %s15, 1
    %p73 = por %p71, %p72
    %p75 = scmp.ne.s32.totalorder %s60, %s74
    %p76 = scmp.eq.s32.totalorder %s15, 0
    %p77 = por %p75, %p76
    %s79 = sadd.s32 %s78, 1
    %p82 = scmp.eq.s32.totalorder %s9, 1
    %p83 = scmp.ne.s32.totalorder %s78, %s80
    %p84 = scmp.eq.s32.totalorder %s9, 0
    %p85 = por %p83, %p84
    %p86 = scmp.ne.s32.totalorder %s78, %s80
    %p87 = scmp.eq.s32.totalorder %s14, 1
    %p88 = por %p86, %p87
    %p89 = scmp.ne.s32.totalorder %s80, %s81
    %p90 = scmp.eq.s32.totalorder %s14, 0
    %p91 = por %p89, %p90
    %p92 = scmp.ne.s32.totalorder %s80, %s81
    %p93 = scmp.eq.s32.totalorder %s15, 1
    %p94 = por %p92, %p93
    %p96 = scmp.ne.s32.totalorder %s81, %s95
    %p97 = scmp.eq.s32.totalorder %s15, 0
    %p98 = por %p96, %p97
    %s99 = ssub.s32 %s16, %s28
    %s100 = ssub.s32 %s17, %s24
    %s101 = sor.u32 %s99, %s100
    %p102 = scmp.eq.s32.totalorder %s101, 0
    %s104 = sadd.s32 %s103, 1
    %s105 = scalar_select %p102, %s103, %s104
    %p108 = pneg %p102
    %p109 = scmp.eq.s32.totalorder %s9, 1
    %p110 = por %p108, %p109
    %p111 = scmp.ne.s32.totalorder %s103, %s106
    %p112 = scmp.eq.s32.totalorder %s9, 0
    %p113 = por %p111, %p112
    %p114 = scmp.ne.s32.totalorder %s103, %s106
    %p115 = scmp.eq.s32.totalorder %s14, 1
    %p116 = por %p114, %p115
    %p117 = scmp.ne.s32.totalorder %s106, %s107
    %p118 = scmp.eq.s32.totalorder %s14, 0
    %p119 = por %p117, %p118
    %p120 = scmp.ne.s32.totalorder %s106, %s107
    %p121 = scmp.eq.s32.totalorder %s15, 1
    %p122 = por %p120, %p121
    %p124 = scmp.ne.s32.totalorder %s107, %s123
    %p125 = scmp.eq.s32.totalorder %s15, 0
    %p126 = por %p124, %p125
    %p127 = scmp.le.s32.totalorder 1, %s9
    %p128 = scmp.lt.s32.totalorder %s9, 3
    %p129 = pnand %p127, %p128
    %p130 = pneg %p129
    // Predicated region
    $region9: #{upsample_embed.1} parent=5 // pred_check
      _
    $region10: #{upsample_embed.1} parent=5 // pred_check_branch
      %132 = sbr.rel (%p129) target = $region12
    $region11: #{upsample_embed.1} parent=5 // pred_region
      %s133 = ssub.s32 %s9, 1
      // Predicated region
      $region13: #{upsample_embed.1} parent=11 // pred_check
        %p134 = pneg %p70
      $region14: #{upsample_embed.1} parent=11 // pred_check_branch
        %136 = sbr.rel (%p134) target = $region16
      $region15: #{upsample_embed.1} parent=11 // pred_region
        _
      $region16: #{upsample_embed.1} parent=11 // pred_fallthru
        _
      // Predicated region
      $region17: #{upsample_embed.1} parent=11 // pred_check
        %p137 = pneg %p91
      $region18: #{upsample_embed.1} parent=11 // pred_check_branch
        %139 = sbr.rel (%p137) target = $region20
      $region19: #{upsample_embed.1} parent=11 // pred_region
        _
      $region20: #{upsample_embed.1} parent=11 // pred_fallthru
        _
    $region12: #{upsample_embed.1} parent=5 // pred_fallthru
      _
    %p140 = scmp.lt.s32.totalorder %s9, 2
    // Predicated region
    $region21: #{upsample_embed.1} parent=5 // pred_check
      %p141 = pneg %p140
    $region22: #{upsample_embed.1} parent=5 // pred_check_branch
      %143 = sbr.rel (%p141) target = $region24
    $region23: #{upsample_embed.1} parent=5 // pred_region
      // Predicated region
      $region25: #{upsample_embed.1} parent=23 // pred_check
        %p144 = pneg %p43
      $region26: #{upsample_embed.1} parent=23 // pred_check_branch
        %146 = sbr.rel (%p144) target = $region28
      $region27: #{upsample_embed.1} parent=23 // pred_region
        %s147 = smul.u32 8, %s17
        %p148 = scmp.lt.s32.totalorder %s16, 1
        %s149 = scalar_select %p148, %s16, 1
        %p150 = scmp.lt.s32.totalorder %s147, 7
        %s151 = scalar_select %p150, %s147, 7
        %s152 = smul.addr %s149, 8
        %s153 = sadd.s32 %s151, %s152
        %s154 = smul.addr %s153, 4
        %s155 = scalar_lea.vmem %s0, %s154
        %s156 = smul.u32 8, %s17
      $region28: #{upsample_embed.1} parent=23 // pred_fallthru
        _
    $region24: #{upsample_embed.1} parent=5 // pred_fallthru
      _
    %p157 = scmp.le.s32.totalorder 1, %s9
    %p158 = scmp.lt.s32.totalorder %s9, 3
    %p159 = pnand %p157, %p158
    %p160 = pneg %p159
    // Predicated region
    $region29: #{upsample_embed.1} parent=5 // pred_check
      _
    $region30: #{upsample_embed.1} parent=5 // pred_check_branch
      %162 = sbr.rel (%p159) target = $region32
    $region31: #{upsample_embed.1} parent=5 // pred_region
      %s163 = ssub.s32 %s9, 1
      %s164 = smul.u32 8, %s19
      %p165 = scmp.lt.s32.totalorder %s18, 1
      %s166 = scalar_select %p165, %s18, 1
      %p167 = scmp.lt.s32.totalorder %s164, 7
      %s168 = scalar_select %p167, %s164, 7
      %s169 = smul.addr %s166, 8
      %s170 = sadd.s32 %s168, %s169
      %s171 = smul.addr %s170, 4
      %s172 = scalar_lea.vmem %s0, %s171
      %p173 = pneg %p49
      %p174 = pneg %p46
      %p175 = pneg %p70
      %p176 = pneg %p67
      %p177 = pneg %p91
      %p178 = pneg %p88
      %p179 = pneg %p119
      %p180 = pneg %p116
      %s181 = smul.u32 8, %s19
      %p182 = scmp.lt.s32.totalorder %s18, 1
      %s183 = scalar_select %p182, %s18, 1
      %p184 = scmp.lt.s32.totalorder %s181, 7
      %s185 = scalar_select %p184, %s181, 7
      %s186 = smul.addr %s183, 32
      %s187 = sadd.s32 %s185, %s186
      %s188 = smul.addr %s187, 8
      %s189 = scalar_lea.vmem %s3, %s188
      %s190 = smul.u32 8, %s19
      %p191 = scmp.lt.s32.totalorder %s18, 1
      %s192 = scalar_select %p191, %s18, 1
      %p193 = scmp.lt.s32.totalorder %s190, 7
      %s194 = scalar_select %p193, %s190, 7
      %s195 = smul.addr %s192, 8
      %s196 = sadd.s32 %s194, %s195
      %s197 = smul.addr %s196, 4
      %s198 = scalar_lea.vmem %s0, %s197
      %s199 = smul.u32 8, %s19
      %s200 = smul.u32 8, %s19
      %p201 = scmp.lt.s32.totalorder %s18, 1
      %s202 = scalar_select %p201, %s18, 1
      %p203 = scmp.lt.s32.totalorder %s200, 7
      %s204 = scalar_select %p203, %s200, 7
      %s205 = smul.addr %s202, 32
      %s206 = sadd.s32 %s204, %s205
      %s207 = smul.addr %s206, 8
      %s208 = scalar_lea.vmem %s3, %s207
      %s209 = smul.u32 8, %s19
      %v210 = vld [vmem:[%s198] sm:$0x77]
      %v211 = vld [vmem:[%s198 + $0x8] sm:$0x77]
      %v212 = vld [vmem:[%s198 + $0x10] sm:$0x77]
      %v213 = vld [vmem:[%s198 + $0x18] sm:$0x77]
      %v214 = vld [vmem:[%s1] sm:$0xff]
      %v215 = vld [vmem:[%s1 + $0x8] sm:$0xff]
      %v216 = vld [vmem:[%s1 + $0x10] sm:$0xff]
      %v217 = vld [vmem:[%s1 + $0x18] sm:$0xff]
      %v218 = vld [vmem:[%s2] sm:$0xff]
      %v219 = vld [vmem:[%s2 + $0x8] sm:$0xff]
      %v220 = vld [vmem:[%s2 + $0x10] sm:$0xff]
      %v221 = vld [vmem:[%s2 + $0x18] sm:$0xff]
      %223 = vset.pattern.permute.xlu0 0
      %224 = vperm.xlu0 %223, %v218
      %v225 = vpop.permute.xlu0 %224
      %228 = vset.pattern.permute.xlu0 0
      %229 = vperm.xlu0 %228, %v219
      %v230 = vpop.permute.xlu0 %229
      %233 = vset.pattern.permute.xlu0 0
      %234 = vperm.xlu0 %233, %v220
      %v235 = vpop.permute.xlu0 %234
      %238 = vset.pattern.permute.xlu0 0
      %239 = vperm.xlu0 %238, %v221
      %v240 = vpop.permute.xlu0 %239
      %v246 = vcombine.high %v210, %v210
      %v247 = vcombine.high %v211, %v211
      %v248 = vcombine.high %v212, %v212
      %v249 = vcombine.high %v213, %v213
      %vm250 = vcmask 23552
      %v252 = vsel %vm250, %v214, 0
      %v255 = vsel %vm250, %v215, 0
      %v258 = vsel %vm250, %v216, 0
      %v261 = vsel %vm250, %v217, 0
      %vm263 = vcmask 1042432
      %v264 = vsel %vm263, %v210, 0
      %v266 = vsel %vm263, %v246, 0
      %v268 = vsel %vm263, %v211, 0
      %v270 = vsel %vm263, %v247, 0
      %v272 = vsel %vm263, %v212, 0
      %v274 = vsel %vm263, %v248, 0
      %v276 = vsel %vm263, %v213, 0
      %v278 = vsel %vm263, %v249, 0
      %280 = vmatprep.subr.mxu0 0.0
      %281 = vmatpush1.msra.mxu0 0.0
      %282 = vmatprep.subr.mxu0 0.0
      %283 = vmatpush1.msra.mxu0 0.0
      %284 = vmatprep.subr.mxu0 0.0
      %285 = vmatpush1.msra.mxu0 0.0
      %286 = vmatprep.subr.mxu0 0.0
      %287 = vmatpush1.msra.mxu0 0.0
      %288 = vmatprep.subr.mxu0 0.0
      %289 = vmatpush1.msra.mxu0 0.0
      %290 = vmatprep.subr.mxu0 0.0
      %291 = vmatpush1.msra.mxu0 0.0
      %292 = vmatprep.subr.mxu0 0.0
      %293 = vmatpush1.msra.mxu0 0.0
      %294 = vmatprep.subr.mxu0 0.0
      %295 = vmatpush1.msra.mxu0 0.0
      %296 = vmatprep.subr.mxu0 0.0
      %297 = vmatpush1.msra.mxu0 0.0
      %298 = vmatprep.subr.mxu0 0.0
      %299 = vmatpush1.msra.mxu0 0.0
      %300 = vmatprep.subr.mxu0 0.0
      %301 = vmatpush1.msra.mxu0 0.0
      %302 = vmatprep.subr.mxu0 0.0
      %303 = vmatpush1.msra.mxu0 0.0
      %304 = vmatprep.subr.mxu0 0.0
      %305 = vmatpush1.msra.mxu0 0.0
      %306 = vmatprep.subr.mxu0 0.0
      %307 = vmatpush1.msra.mxu0 0.0
      %308 = vmatprep.subr.mxu0 0.0
      %309 = vmatpush1.msra.mxu0 0.0
      %310 = vmatprep.subr.mxu0 %v266
      %311 = vmatpush1.msra.mxu0 %v264
      %312 = vmatprep.subr.mxu0 0.0
      %313 = vmatpush2.msra.mxu0 0.0
      %314 = vmatprep.subr.mxu0 0.0
      %315 = vmatpush2.msra.mxu0 0.0
      %316 = vmatprep.subr.mxu0 0.0
      %317 = vmatpush2.msra.mxu0 0.0
      %318 = vmatprep.subr.mxu0 0.0
      %319 = vmatpush2.msra.mxu0 0.0
      %320 = vmatprep.subr.mxu0 0.0
      %321 = vmatpush2.msra.mxu0 0.0
      %322 = vmatprep.subr.mxu0 0.0
      %323 = vmatpush2.msra.mxu0 0.0
      %324 = vmatprep.subr.mxu0 0.0
      %325 = vmatpush2.msra.mxu0 0.0
      %326 = vmatprep.subr.mxu0 0.0
      %327 = vmatpush2.msra.mxu0 0.0
      %328 = vmatprep.subr.mxu0 0.0
      %329 = vmatpush2.msra.mxu0 0.0
      %330 = vmatprep.subr.mxu0 0.0
      %331 = vmatpush2.msra.mxu0 0.0
      %332 = vmatprep.subr.mxu0 0.0
      %333 = vmatpush2.msra.mxu0 0.0
      %334 = vmatprep.subr.mxu0 0.0
      %335 = vmatpush2.msra.mxu0 0.0
      %336 = vmatprep.subr.mxu0 0.0
      %337 = vmatpush2.msra.mxu0 0.0
      %338 = vmatprep.subr.mxu0 0.0
      %339 = vmatpush2.msra.mxu0 0.0
      %340 = vmatprep.subr.mxu0 0.0
      %341 = vmatpush2.msra.mxu0 0.0
      %342 = vmatprep.subr.mxu0 0.0
      %343 = vmatpush2.msra.mxu0 0.0
      %344 = vmatprep.mubr.f32.mxu0 0.0
      %345 = vmatmul.mubr.f32.gmra.mxu0 %v252
      %v346 = vpop.f32.mrf.mxu0
      %v347 = vadd.f32 %v225, %v346
      %v348 = vpop.f32.mrf.mxu0
      %v349 = vadd.f32 %v225, %v348
      %350 = vmatprep.mubr.f32.mxu0 0.0
      %351 = vmatmul.mubr.f32.gmra.mxu0 %v255
      %v352 = vpop.f32.mrf.mxu0
      %v353 = vadd.f32 %v230, %v352
      %v354 = vpop.f32.mrf.mxu0
      %v355 = vadd.f32 %v230, %v354
      %356 = vmatprep.mubr.f32.mxu0 0.0
      %357 = vmatmul.mubr.f32.gmra.mxu0 %v258
      %v358 = vpop.f32.mrf.mxu0
      %v359 = vadd.f32 %v235, %v358
      %v360 = vpop.f32.mrf.mxu0
      %v361 = vadd.f32 %v235, %v360
      %362 = vmatprep.mubr.f32.mxu0 0.0
      %363 = vmatmul.mubr.f32.gmra.mxu0 %v261
      %v364 = vpop.f32.mrf.mxu0
      %v365 = vadd.f32 %v240, %v364
      %v366 = vpop.f32.mrf.mxu0
      %v367 = vadd.f32 %v240, %v366
      %368 = vdwg.mxu0
      %369 = vmatprep.subr.mxu0 0.0
      %370 = vmatpush1.msra.mxu0 0.0
      %371 = vmatprep.subr.mxu0 0.0
      %372 = vmatpush1.msra.mxu0 0.0
      %373 = vmatprep.subr.mxu0 0.0
      %374 = vmatpush1.msra.mxu0 0.0
      %375 = vmatprep.subr.mxu0 0.0
      %376 = vmatpush1.msra.mxu0 0.0
      %377 = vmatprep.subr.mxu0 0.0
      %378 = vmatpush1.msra.mxu0 0.0
      %379 = vmatprep.subr.mxu0 0.0
      %380 = vmatpush1.msra.mxu0 0.0
      %381 = vmatprep.subr.mxu0 0.0
      %382 = vmatpush1.msra.mxu0 0.0
      %383 = vmatprep.subr.mxu0 0.0
      %384 = vmatpush1.msra.mxu0 0.0
      %385 = vmatprep.subr.mxu0 0.0
      %386 = vmatpush1.msra.mxu0 0.0
      %387 = vmatprep.subr.mxu0 0.0
      %388 = vmatpush1.msra.mxu0 0.0
      %389 = vmatprep.subr.mxu0 0.0
      %390 = vmatpush1.msra.mxu0 0.0
      %391 = vmatprep.subr.mxu0 0.0
      %392 = vmatpush1.msra.mxu0 0.0
      %393 = vmatprep.subr.mxu0 0.0
      %394 = vmatpush1.msra.mxu0 0.0
      %395 = vmatprep.subr.mxu0 0.0
      %396 = vmatpush1.msra.mxu0 0.0
      %397 = vmatprep.subr.mxu0 0.0
      %398 = vmatpush1.msra.mxu0 0.0
      %399 = vmatprep.subr.mxu0 %v270
      %400 = vmatpush1.msra.mxu0 %v268
      %401 = vmatprep.subr.mxu0 0.0
      %402 = vmatpush2.msra.mxu0 0.0
      %403 = vmatprep.subr.mxu0 0.0
      %404 = vmatpush2.msra.mxu0 0.0
      %405 = vmatprep.subr.mxu0 0.0
      %406 = vmatpush2.msra.mxu0 0.0
      %407 = vmatprep.subr.mxu0 0.0
      %408 = vmatpush2.msra.mxu0 0.0
      %409 = vmatprep.subr.mxu0 0.0
      %410 = vmatpush2.msra.mxu0 0.0
      %411 = vmatprep.subr.mxu0 0.0
      %412 = vmatpush2.msra.mxu0 0.0
      %413 = vmatprep.subr.mxu0 0.0
      %414 = vmatpush2.msra.mxu0 0.0
      %415 = vmatprep.subr.mxu0 0.0
      %416 = vmatpush2.msra.mxu0 0.0
      %417 = vmatprep.subr.mxu0 0.0
      %418 = vmatpush2.msra.mxu0 0.0
      %419 = vmatprep.subr.mxu0 0.0
      %420 = vmatpush2.msra.mxu0 0.0
      %421 = vmatprep.subr.mxu0 0.0
      %422 = vmatpush2.msra.mxu0 0.0
      %423 = vmatprep.subr.mxu0 0.0
      %424 = vmatpush2.msra.mxu0 0.0
      %425 = vmatprep.subr.mxu0 0.0
      %426 = vmatpush2.msra.mxu0 0.0
      %427 = vmatprep.subr.mxu0 0.0
      %428 = vmatpush2.msra.mxu0 0.0
      %429 = vmatprep.subr.mxu0 0.0
      %430 = vmatpush2.msra.mxu0 0.0
      %431 = vmatprep.subr.mxu0 0.0
      %432 = vmatpush2.msra.mxu0 0.0
      %433 = vmatprep.mubr.f32.mxu0 0.0
      %434 = vmatmul.mubr.f32.gmra.mxu0 %v252
      %v435 = vpop.f32.mrf.mxu0
      %v436 = vadd.f32 %v225, %v435
      %v437 = vpop.f32.mrf.mxu0
      %v438 = vadd.f32 %v225, %v437
      %439 = vmatprep.mubr.f32.mxu0 0.0
      %440 = vmatmul.mubr.f32.gmra.mxu0 %v255
      %v441 = vpop.f32.mrf.mxu0
      %v442 = vadd.f32 %v230, %v441
      %v443 = vpop.f32.mrf.mxu0
      %v444 = vadd.f32 %v230, %v443
      %445 = vmatprep.mubr.f32.mxu0 0.0
      %446 = vmatmul.mubr.f32.gmra.mxu0 %v258
      %v447 = vpop.f32.mrf.mxu0
      %v448 = vadd.f32 %v235, %v447
      %v449 = vpop.f32.mrf.mxu0
      %v450 = vadd.f32 %v235, %v449
      %451 = vmatprep.mubr.f32.mxu0 0.0
      %452 = vmatmul.mubr.f32.gmra.mxu0 %v261
      %v453 = vpop.f32.mrf.mxu0
      %v454 = vadd.f32 %v240, %v453
      %v455 = vpop.f32.mrf.mxu0
      %v456 = vadd.f32 %v240, %v455
      %457 = vdwg.mxu0
      %458 = vmatprep.subr.mxu0 0.0
      %459 = vmatpush1.msra.mxu0 0.0
      %460 = vmatprep.subr.mxu0 0.0
      %461 = vmatpush1.msra.mxu0 0.0
      %462 = vmatprep.subr.mxu0 0.0
      %463 = vmatpush1.msra.mxu0 0.0
      %464 = vmatprep.subr.mxu0 0.0
      %465 = vmatpush1.msra.mxu0 0.0
      %466 = vmatprep.subr.mxu0 0.0
      %467 = vmatpush1.msra.mxu0 0.0
      %468 = vmatprep.subr.mxu0 0.0
      %469 = vmatpush1.msra.mxu0 0.0
      %470 = vmatprep.subr.mxu0 0.0
      %471 = vmatpush1.msra.mxu0 0.0
      %472 = vmatprep.subr.mxu0 0.0
      %473 = vmatpush1.msra.mxu0 0.0
      %474 = vmatprep.subr.mxu0 0.0
      %475 = vmatpush1.msra.mxu0 0.0
      %476 = vmatprep.subr.mxu0 0.0
      %477 = vmatpush1.msra.mxu0 0.0
      %478 = vmatprep.subr.mxu0 0.0
      %479 = vmatpush1.msra.mxu0 0.0
      %480 = vmatprep.subr.mxu0 0.0
      %481 = vmatpush1.msra.mxu0 0.0
      %482 = vmatprep.subr.mxu0 0.0
      %483 = vmatpush1.msra.mxu0 0.0
      %484 = vmatprep.subr.mxu0 0.0
      %485 = vmatpush1.msra.mxu0 0.0
      %486 = vmatprep.subr.mxu0 0.0
      %487 = vmatpush1.msra.mxu0 0.0
      %488 = vmatprep.subr.mxu0 %v274
      %489 = vmatpush1.msra.mxu0 %v272
      %490 = vmatprep.subr.mxu0 0.0
      %491 = vmatpush2.msra.mxu0 0.0
      %492 = vmatprep.subr.mxu0 0.0
      %493 = vmatpush2.msra.mxu0 0.0
      %494 = vmatprep.subr.mxu0 0.0
      %495 = vmatpush2.msra.mxu0 0.0
      %496 = vmatprep.subr.mxu0 0.0
      %497 = vmatpush2.msra.mxu0 0.0
      %498 = vmatprep.subr.mxu0 0.0
      %499 = vmatpush2.msra.mxu0 0.0
      %500 = vmatprep.subr.mxu0 0.0
      %501 = vmatpush2.msra.mxu0 0.0
      %502 = vmatprep.subr.mxu0 0.0
      %503 = vmatpush2.msra.mxu0 0.0
      %504 = vmatprep.subr.mxu0 0.0
      %505 = vmatpush2.msra.mxu0 0.0
      %506 = vmatprep.subr.mxu0 0.0
      %507 = vmatpush2.msra.mxu0 0.0
      %508 = vmatprep.subr.mxu0 0.0
      %509 = vmatpush2.msra.mxu0 0.0
      %510 = vmatprep.subr.mxu0 0.0
      %511 = vmatpush2.msra.mxu0 0.0
      %512 = vmatprep.subr.mxu0 0.0
      %513 = vmatpush2.msra.mxu0 0.0
      %514 = vmatprep.subr.mxu0 0.0
      %515 = vmatpush2.msra.mxu0 0.0
      %516 = vmatprep.subr.mxu0 0.0
      %517 = vmatpush2.msra.mxu0 0.0
      %518 = vmatprep.subr.mxu0 0.0
      %519 = vmatpush2.msra.mxu0 0.0
      %520 = vmatprep.subr.mxu0 0.0
      %521 = vmatpush2.msra.mxu0 0.0
      %522 = vmatprep.mubr.f32.mxu0 0.0
      %523 = vmatmul.mubr.f32.gmra.mxu0 %v252
      %v524 = vpop.f32.mrf.mxu0
      %v525 = vadd.f32 %v225, %v524
      %v526 = vpop.f32.mrf.mxu0
      %v527 = vadd.f32 %v225, %v526
      %528 = vmatprep.mubr.f32.mxu0 0.0
      %529 = vmatmul.mubr.f32.gmra.mxu0 %v255
      %v530 = vpop.f32.mrf.mxu0
      %v531 = vadd.f32 %v230, %v530
      %v532 = vpop.f32.mrf.mxu0
      %v533 = vadd.f32 %v230, %v532
      %534 = vmatprep.mubr.f32.mxu0 0.0
      %535 = vmatmul.mubr.f32.gmra.mxu0 %v258
      %v536 = vpop.f32.mrf.mxu0
      %v537 = vadd.f32 %v235, %v536
      %v538 = vpop.f32.mrf.mxu0
      %v539 = vadd.f32 %v235, %v538
      %540 = vmatprep.mubr.f32.mxu0 0.0
      %541 = vmatmul.mubr.f32.gmra.mxu0 %v261
      %v542 = vpop.f32.mrf.mxu0
      %v543 = vadd.f32 %v240, %v542
      %v544 = vpop.f32.mrf.mxu0
      %v545 = vadd.f32 %v240, %v544
      %546 = vdwg.mxu0
      %547 = vmatprep.subr.mxu0 0.0
      %548 = vmatpush1.msra.mxu0 0.0
      %549 = vmatprep.subr.mxu0 0.0
      %550 = vmatpush1.msra.mxu0 0.0
      %551 = vmatprep.subr.mxu0 0.0
      %552 = vmatpush1.msra.mxu0 0.0
      %553 = vmatprep.subr.mxu0 0.0
      %554 = vmatpush1.msra.mxu0 0.0
      %555 = vmatprep.subr.mxu0 0.0
      %556 = vmatpush1.msra.mxu0 0.0
      %557 = vmatprep.subr.mxu0 0.0
      %558 = vmatpush1.msra.mxu0 0.0
      %559 = vmatprep.subr.mxu0 0.0
      %560 = vmatpush1.msra.mxu0 0.0
      %561 = vmatprep.subr.mxu0 0.0
      %562 = vmatpush1.msra.mxu0 0.0
      %563 = vmatprep.subr.mxu0 0.0
      %564 = vmatpush1.msra.mxu0 0.0
      %565 = vmatprep.subr.mxu0 0.0
      %566 = vmatpush1.msra.mxu0 0.0
      %567 = vmatprep.subr.mxu0 0.0
      %568 = vmatpush1.msra.mxu0 0.0
      %569 = vmatprep.subr.mxu0 0.0
      %570 = vmatpush1.msra.mxu0 0.0
      %571 = vmatprep.subr.mxu0 0.0
      %572 = vmatpush1.msra.mxu0 0.0
      %573 = vmatprep.subr.mxu0 0.0
      %574 = vmatpush1.msra.mxu0 0.0
      %575 = vmatprep.subr.mxu0 0.0
      %576 = vmatpush1.msra.mxu0 0.0
      %577 = vmatprep.subr.mxu0 %v278
      %578 = vmatpush1.msra.mxu0 %v276
      %579 = vmatprep.subr.mxu0 0.0
      %580 = vmatpush2.msra.mxu0 0.0
      %581 = vmatprep.subr.mxu0 0.0
      %582 = vmatpush2.msra.mxu0 0.0
      %583 = vmatprep.subr.mxu0 0.0
      %584 = vmatpush2.msra.mxu0 0.0
      %585 = vmatprep.subr.mxu0 0.0
      %586 = vmatpush2.msra.mxu0 0.0
      %587 = vmatprep.subr.mxu0 0.0
      %588 = vmatpush2.msra.mxu0 0.0
      %589 = vmatprep.subr.mxu0 0.0
      %590 = vmatpush2.msra.mxu0 0.0
      %591 = vmatprep.subr.mxu0 0.0
      %592 = vmatpush2.msra.mxu0 0.0
      %593 = vmatprep.subr.mxu0 0.0
      %594 = vmatpush2.msra.mxu0 0.0
      %595 = vmatprep.subr.mxu0 0.0
      %596 = vmatpush2.msra.mxu0 0.0
      %597 = vmatprep.subr.mxu0 0.0
      %598 = vmatpush2.msra.mxu0 0.0
      %599 = vmatprep.subr.mxu0 0.0
      %600 = vmatpush2.msra.mxu0 0.0
      %601 = vmatprep.subr.mxu0 0.0
      %602 = vmatpush2.msra.mxu0 0.0
      %603 = vmatprep.subr.mxu0 0.0
      %604 = vmatpush2.msra.mxu0 0.0
      %605 = vmatprep.subr.mxu0 0.0
      %606 = vmatpush2.msra.mxu0 0.0
      %607 = vmatprep.subr.mxu0 0.0
      %608 = vmatpush2.msra.mxu0 0.0
      %609 = vmatprep.subr.mxu0 0.0
      %610 = vmatpush2.msra.mxu0 0.0
      %611 = vmatprep.mubr.f32.mxu0 0.0
      %612 = vmatmul.mubr.f32.gmra.mxu0 %v252
      %v613 = vpop.f32.mrf.mxu0
      %v614 = vadd.f32 %v225, %v613
      %v615 = vpop.f32.mrf.mxu0
      %v616 = vadd.f32 %v225, %v615
      %617 = vmatprep.mubr.f32.mxu0 0.0
      %618 = vmatmul.mubr.f32.gmra.mxu0 %v255
      %v619 = vpop.f32.mrf.mxu0
      %v620 = vadd.f32 %v230, %v619
      %v621 = vpop.f32.mrf.mxu0
      %v622 = vadd.f32 %v230, %v621
      %623 = vmatprep.mubr.f32.mxu0 0.0
      %624 = vmatmul.mubr.f32.gmra.mxu0 %v258
      %v625 = vpop.f32.mrf.mxu0
      %v626 = vadd.f32 %v235, %v625
      %v627 = vpop.f32.mrf.mxu0
      %v628 = vadd.f32 %v235, %v627
      %629 = vmatprep.mubr.f32.mxu0 0.0
      %630 = vmatmul.mubr.f32.gmra.mxu0 %v261
      %v631 = vpop.f32.mrf.mxu0
      %v632 = vadd.f32 %v240, %v631
      %v633 = vpop.f32.mrf.mxu0
      %v634 = vadd.f32 %v240, %v633
      %635 = vdwg.mxu0
      %636 = vst [vmem:[%s208] sm:$0xff] %v347
      %637 = vst [vmem:[%s208 + $0x8] sm:$0xff] %v349
      %638 = vst [vmem:[%s208 + $0x10] sm:$0xff] %v436
      %639 = vst [vmem:[%s208 + $0x18] sm:$0xff] %v438
      %640 = vst [vmem:[%s208 + $0x20] sm:$0xff] %v525
      %641 = vst [vmem:[%s208 + $0x28] sm:$0xff] %v527
      %642 = vst [vmem:[%s208 + $0x30] sm:$0xff] %v614
      %643 = vst [vmem:[%s208 + $0x38] sm:$0xff] %v616
      %644 = vst [vmem:[%s208 + $0x40] sm:$0xff] %v353
      %645 = vst [vmem:[%s208 + $0x48] sm:$0xff] %v355
      %646 = vst [vmem:[%s208 + $0x50] sm:$0xff] %v442
      %647 = vst [vmem:[%s208 + $0x58] sm:$0xff] %v444
      %648 = vst [vmem:[%s208 + $0x60] sm:$0xff] %v531
      %649 = vst [vmem:[%s208 + $0x68] sm:$0xff] %v533
      %650 = vst [vmem:[%s208 + $0x70] sm:$0xff] %v620
      %651 = vst [vmem:[%s208 + $0x78] sm:$0xff] %v622
      %652 = vst [vmem:[%s208 + $0x80] sm:$0xff] %v359
      %653 = vst [vmem:[%s208 + $0x88] sm:$0xff] %v361
      %654 = vst [vmem:[%s208 + $0x90] sm:$0xff] %v448
      %655 = vst [vmem:[%s208 + $0x98] sm:$0xff] %v450
      %656 = vst [vmem:[%s208 + $0xa0] sm:$0xff] %v537
      %657 = vst [vmem:[%s208 + $0xa8] sm:$0xff] %v539
      %658 = vst [vmem:[%s208 + $0xb0] sm:$0xff] %v626
      %659 = vst [vmem:[%s208 + $0xb8] sm:$0xff] %v628
      %660 = vst [vmem:[%s208 + $0xc0] sm:$0xff] %v365
      %661 = vst [vmem:[%s208 + $0xc8] sm:$0xff] %v367
      %662 = vst [vmem:[%s208 + $0xd0] sm:$0xff] %v454
      %663 = vst [vmem:[%s208 + $0xd8] sm:$0xff] %v456
      %664 = vst [vmem:[%s208 + $0xe0] sm:$0xff] %v543
      %665 = vst [vmem:[%s208 + $0xe8] sm:$0xff] %v545
      %666 = vst [vmem:[%s208 + $0xf0] sm:$0xff] %v632
      %667 = vst [vmem:[%s208 + $0xf8] sm:$0xff] %v634
      %s668 = smul.u32 8, %s19
      %p669 = scmp.lt.s32.totalorder %s18, 1
      %s670 = scalar_select %p669, %s18, 1
      %p671 = scmp.lt.s32.totalorder %s668, 7
      %s672 = scalar_select %p671, %s668, 7
      %s673 = smul.addr %s670, 32
      %s674 = sadd.s32 %s672, %s673
      %s675 = smul.addr %s674, 8
      %s676 = scalar_lea.vmem %s3, %s675
      // Predicated region
      $region33: #{upsample_embed.1} parent=31 // pred_check
        %p677 = pneg %p116
      $region34: #{upsample_embed.1} parent=31 // pred_check_branch
        %679 = sbr.rel (%p677) target = $region36
      $region35: #{upsample_embed.1} parent=31 // pred_region
        %s680 = smul.u32 8, %s19
      $region36: #{upsample_embed.1} parent=31 // pred_fallthru
        _
    $region32: #{upsample_embed.1} parent=5 // pred_fallthru
      _
    %p681 = scmp.le.s32.totalorder 2, %s9
    // Predicated region
    $region37: #{upsample_embed.1} parent=5 // pred_check
      %p682 = pneg %p681
    $region38: #{upsample_embed.1} parent=5 // pred_check_branch
      %684 = sbr.rel (%p682) target = $region40
    $region39: #{upsample_embed.1} parent=5 // pred_region
      %s685 = ssub.s32 %s9, 2
      // Predicated region
      $region41: #{upsample_embed.1} parent=39 // pred_check
        %p686 = pneg %p122
      $region42: #{upsample_embed.1} parent=39 // pred_check_branch
        %688 = sbr.rel (%p686) target = $region44
      $region43: #{upsample_embed.1} parent=39 // pred_region
        %s689 = smul.u32 8, %s21
        %p690 = scmp.lt.s32.totalorder %s20, 1
        %s691 = scalar_select %p690, %s20, 1
        %p692 = scmp.lt.s32.totalorder %s689, 7
        %s693 = scalar_select %p692, %s689, 7
        %s694 = smul.addr %s691, 32
        %s695 = sadd.s32 %s693, %s694
        %s696 = smul.addr %s695, 8
        %s697 = scalar_lea.vmem %s3, %s696
      $region44: #{upsample_embed.1} parent=39 // pred_fallthru
        _
    $region40: #{upsample_embed.1} parent=5 // pred_fallthru
      _
  $region6: #{upsample_embed.1} parent=0 // loop_footer
    %s13 = sadd.s32 1, %s9
  $region7: #{upsample_embed.1} parent=0 // loop_footer_branch
    %8 = sbr.rel target = $region3
  $region8: #{upsample_embed.1} parent=0 // loop_exit
    _

</llo_original>
